<compile_context>
chip_gen: v7x
topology: tpu7x:2x2x1
jax: 0.10.0
libtpu: 0.0.40
codegen_flags: <defaults>
</compile_context>

<pallas_src>
import functools

import jax
import jax.numpy as jnp
from jax.experimental import pallas as pl
from jax.experimental.pallas import tpu as pltpu


def _round_up(n: int, m: int) -> int:
    return ((n + m - 1) // m) * m


def _mlp_kernel(x_ref, w1_ref, b1_ref, w2_ref, b2_ref, w3_ref, b3_ref, o_ref):
    # x_ref: [tb, D]   w1: [D, 256] bf16   w2: [256, 128] bf16   w3: [128, 2] bf16
    # Matmuls run on the MXU in bf16 with f32 accumulation; bias add + ReLU run
    # on the VPU in f32; downcast only at the final store.
    xb = x_ref[...].astype(jnp.bfloat16)

    h1 = jnp.dot(xb, w1_ref[...], preferred_element_type=jnp.float32) + b1_ref[...]
    h1 = jnp.maximum(h1, 0.0)

    h2 = jnp.dot(h1.astype(jnp.bfloat16), w2_ref[...],
                 preferred_element_type=jnp.float32) + b2_ref[...]
    h2 = jnp.maximum(h2, 0.0)

    out = jnp.dot(h2.astype(jnp.bfloat16), w3_ref[...],
                  preferred_element_type=jnp.float32) + b3_ref[...]
    o_ref[...] = out.astype(o_ref.dtype)


@functools.partial(jax.jit, static_argnames=("block_b",))
def location_coordinate_head(x, params, block_b=512):
    """Fused MLP forward.  x: [B, D] -> [B, 2] (x.dtype)."""
    w1, b1, w2, b2, w3, b3 = params
    B, D = x.shape
    H1 = w1.shape[1]   # 256
    H2 = w2.shape[1]   # 128
    O = w3.shape[1]    # 2

    # Effective batch tile: never bigger than the (8-aligned) batch itself, so
    # small batches don't pay for a huge padded tile; capped by block_b, which
    # should be a multiple of 256 for full MXU passes on all generations.
    tb = min(block_b, _round_up(B, 8))
    B_pad = _round_up(B, tb)
    if B_pad != B:
        x = jnp.pad(x, ((0, B_pad - B), (0, 0)))

    # Weights in bf16 for the MXU (f32 accumulation inside the kernel); biases
    # stay f32 and are kept 2D ([1, N]) so they broadcast cleanly in-kernel.
    w1c = w1.astype(jnp.bfloat16)
    w2c = w2.astype(jnp.bfloat16)
    w3c = w3.astype(jnp.bfloat16)
    b1_2d = b1.reshape(1, H1).astype(jnp.float32)
    b2_2d = b2.reshape(1, H2).astype(jnp.float32)
    b3_2d = b3.reshape(1, O).astype(jnp.float32)

    grid = (pl.cdiv(B_pad, tb),)

    out = pl.pallas_call(
        _mlp_kernel,
        out_shape=jax.ShapeDtypeStruct((B_pad, O), x.dtype),
        grid_spec=pltpu.PrefetchScalarGridSpec(
            num_scalar_prefetch=0,
            grid=grid,
            in_specs=[
                pl.BlockSpec((tb, D), lambda i: (i, 0)),    # x tile (pipelined)
                pl.BlockSpec((D, H1), lambda i: (0, 0)),    # w1 (grid-invariant)
                pl.BlockSpec((1, H1), lambda i: (0, 0)),    # b1
                pl.BlockSpec((H1, H2), lambda i: (0, 0)),   # w2
                pl.BlockSpec((1, H2), lambda i: (0, 0)),    # b2
                pl.BlockSpec((H2, O), lambda i: (0, 0)),    # w3
                pl.BlockSpec((1, O), lambda i: (0, 0)),     # b3
            ],
            out_specs=pl.BlockSpec((tb, O), lambda i: (i, 0)),
        ),
        compiler_params=pltpu.CompilerParams(
            dimension_semantics=("parallel",),          # batch tiles are independent
            vmem_limit_bytes=64 * 1024 * 1024,          # allow fat x tiles, <= physical everywhere
        ),
    )(x, w1c, b1_2d, w2c, b2_2d, w3c, b3_2d)

    return out[:B]


def init_params(key, input_size):
    """Deterministic synthetic init (shapes match the module's nn.Linear layers)."""
    k1, k2, k3, k4, k5, k6 = jax.random.split(key, 6)

    def lin(kw, kb, fan_in, fan_out):
        lim = 1.0 / jnp.sqrt(fan_in)
        w = jax.random.uniform(kw, (fan_in, fan_out), jnp.float32, -lim, lim)
        b = jax.random.uniform(kb, (fan_out,), jnp.float32, -lim, lim)
        return w, b

    w1, b1 = lin(k1, k2, input_size, 256)
    w2, b2 = lin(k3, k4, 256, 128)
    w3, b3 = lin(k5, k6, 128, 2)
    return (w1, b1, w2, b2, w3, b3)


def reference_forward(x, params):
    """XLA reference mirroring the kernel's bf16-matmul / f32-accumulate math."""
    w1, b1, w2, b2, w3, b3 = params
    bf = jnp.bfloat16
    h1 = jnp.maximum(jnp.dot(x.astype(bf), w1.astype(bf),
                             preferred_element_type=jnp.float32) + b1, 0.0)
    h2 = jnp.maximum(jnp.dot(h1.astype(bf), w2.astype(bf),
                             preferred_element_type=jnp.float32) + b2, 0.0)
    return jnp.dot(h2.astype(bf), w3.astype(bf),
                   preferred_element_type=jnp.float32) + b3


if __name__ == "__main__":
    key = jax.random.PRNGKey(0)
    kx, kx2, kp = jax.random.split(key, 3)

    D = 32                                   # input_size
    params = init_params(kp, D)

    # Small, non-tile-aligned batch: exercises the pad + slice path (B=10 -> 16-row tile).
    x_small = jax.random.normal(kx, (10, D), jnp.float32)
    out_small = jax.block_until_ready(location_coordinate_head(x_small, params))
    ref_small = reference_forward(x_small, params)
    assert out_small.shape == (10, 2), out_small.shape
    assert jnp.allclose(out_small, ref_small, atol=2e-3, rtol=2e-3), (
        f"max abs err {jnp.max(jnp.abs(out_small - ref_small))}")

    # Larger batch: exercises the multi-step pipelined grid (1024 rows -> two 512-row tiles).
    x_big = jax.random.normal(kx2, (1024, D), jnp.float32)
    out_big = jax.block_until_ready(location_coordinate_head(x_big, params))
    ref_big = reference_forward(x_big, params)
    assert out_big.shape == (1024, 2), out_big.shape
    assert jnp.allclose(out_big, ref_big, atol=2e-3, rtol=2e-3), (
        f"max abs err {jnp.max(jnp.abs(out_big - ref_big))}")

    print("KERNEL_OK")
</pallas_src>

<mosaic_0001>
module attributes {stable_mosaic.version = 11 : i64} {
  func.func @_mlp_kernel(%arg0: i32, %arg1: memref<16x32xf32, #tpu.memory_space<vmem>>, %arg2: memref<32x256xbf16, #tpu.memory_space<vmem>>, %arg3: memref<1x256xf32, #tpu.memory_space<vmem>>, %arg4: memref<256x128xbf16, #tpu.memory_space<vmem>>, %arg5: memref<1x128xf32, #tpu.memory_space<vmem>>, %arg6: memref<128x2xbf16, #tpu.memory_space<vmem>>, %arg7: memref<1x2xf32, #tpu.memory_space<vmem>>, %arg8: memref<16x2xf32, #tpu.memory_space<vmem>>) attributes {dimension_semantics = [#tpu.dimension_semantics<parallel>], iteration_bounds = array<i64: 1>, scalar_prefetch = 0 : i64, scratch_operands = 0 : i64, tpu.core_type = #tpu.core_type<tc>, window_params = [{transform_indices = @transform_0, window_bounds = array<i64: 16, 32>}, {pipeline_mode = #tpu.pipeline_mode<synchronous>, transform_indices = @transform_1, window_bounds = array<i64: 32, 256>}, {pipeline_mode = #tpu.pipeline_mode<synchronous>, transform_indices = @transform_2, window_bounds = array<i64: 1, 256>}, {pipeline_mode = #tpu.pipeline_mode<synchronous>, transform_indices = @transform_3, window_bounds = array<i64: 256, 128>}, {pipeline_mode = #tpu.pipeline_mode<synchronous>, transform_indices = @transform_4, window_bounds = array<i64: 1, 128>}, {pipeline_mode = #tpu.pipeline_mode<synchronous>, transform_indices = @transform_5, window_bounds = array<i64: 128, 2>}, {pipeline_mode = #tpu.pipeline_mode<synchronous>, transform_indices = @transform_6, window_bounds = array<i64: 1, 2>}, {transform_indices = @transform_7, window_bounds = array<i64: 16, 2>}]} {
    %c0 = arith.constant 0 : index
    %c0_0 = arith.constant 0 : index
    %0 = vector.load %arg1[%c0, %c0_0] : memref<16x32xf32, #tpu.memory_space<vmem>>, vector<16x32xf32>
    %1 = arith.truncf %0 : vector<16x32xf32> to vector<16x32xbf16>
    %c0_1 = arith.constant 0 : index
    %c0_2 = arith.constant 0 : index
    %2 = vector.load %arg2[%c0_1, %c0_2] : memref<32x256xbf16, #tpu.memory_space<vmem>>, vector<32x256xbf16>
    %cst = arith.constant dense<0.000000e+00> : vector<16x256xf32>
    %3 = tpu.matmul %1, %2, %cst {dimension_numbers = #tpu.dot_dimension_numbers<[1], [0], [0], [1], [0, 0, 1, 1], [], []>} : vector<16x32xbf16>, vector<32x256xbf16>, vector<16x256xf32> -> vector<16x256xf32>
    %c0_3 = arith.constant 0 : index
    %c0_4 = arith.constant 0 : index
    %4 = vector.load %arg3[%c0_3, %c0_4] : memref<1x256xf32, #tpu.memory_space<vmem>>, vector<1x256xf32>
    %5 = vector.broadcast %4 : vector<1x256xf32> to vector<16x256xf32>
    %6 = arith.addf %3, %5 : vector<16x256xf32>
    %cst_5 = arith.constant 0.000000e+00 : f32
    %7 = vector.broadcast %cst_5 : f32 to vector<16x256xf32>
    %8 = arith.maximumf %6, %7 : vector<16x256xf32>
    %9 = arith.truncf %8 : vector<16x256xf32> to vector<16x256xbf16>
    %c0_6 = arith.constant 0 : index
    %c0_7 = arith.constant 0 : index
    %10 = vector.load %arg4[%c0_6, %c0_7] : memref<256x128xbf16, #tpu.memory_space<vmem>>, vector<256x128xbf16>
    %cst_8 = arith.constant dense<0.000000e+00> : vector<16x128xf32>
    %11 = tpu.matmul %9, %10, %cst_8 {dimension_numbers = #tpu.dot_dimension_numbers<[1], [0], [0], [1], [0, 0, 1, 1], [], []>} : vector<16x256xbf16>, vector<256x128xbf16>, vector<16x128xf32> -> vector<16x128xf32>
    %c0_9 = arith.constant 0 : index
    %c0_10 = arith.constant 0 : index
    %12 = vector.load %arg5[%c0_9, %c0_10] : memref<1x128xf32, #tpu.memory_space<vmem>>, vector<1x128xf32>
    %13 = vector.broadcast %12 : vector<1x128xf32> to vector<16x128xf32>
    %14 = arith.addf %11, %13 : vector<16x128xf32>
    %cst_11 = arith.constant 0.000000e+00 : f32
    %15 = vector.broadcast %cst_11 : f32 to vector<16x128xf32>
    %16 = arith.maximumf %14, %15 : vector<16x128xf32>
    %17 = arith.truncf %16 : vector<16x128xf32> to vector<16x128xbf16>
    %c0_12 = arith.constant 0 : index
    %c0_13 = arith.constant 0 : index
    %18 = vector.load %arg6[%c0_12, %c0_13] : memref<128x2xbf16, #tpu.memory_space<vmem>>, vector<128x2xbf16>
    %cst_14 = arith.constant dense<0.000000e+00> : vector<16x2xf32>
    %19 = tpu.matmul %17, %18, %cst_14 {dimension_numbers = #tpu.dot_dimension_numbers<[1], [0], [0], [1], [0, 0, 1, 1], [], []>} : vector<16x128xbf16>, vector<128x2xbf16>, vector<16x2xf32> -> vector<16x2xf32>
    %c0_15 = arith.constant 0 : index
    %c0_16 = arith.constant 0 : index
    %20 = vector.load %arg7[%c0_15, %c0_16] : memref<1x2xf32, #tpu.memory_space<vmem>>, vector<1x2xf32>
    %21 = vector.broadcast %20 : vector<1x2xf32> to vector<16x2xf32>
    %22 = arith.addf %19, %21 : vector<16x2xf32>
    %c0_17 = arith.constant 0 : index
    %c0_18 = arith.constant 0 : index
    %23 = vector.load %arg8[%c0_17, %c0_18] : memref<16x2xf32, #tpu.memory_space<vmem>>, vector<16x2xf32>
    tpu.vector_store %arg8[%c0_17, %c0_18], %22 {strides = array<i32>} : memref<16x2xf32, #tpu.memory_space<vmem>>, vector<16x2xf32>,
    return
  }
  func.func @transform_0(%arg0: i32) -> (i32, i32) {
    %c0_i32 = arith.constant 0 : i32
    %c0_i32_0 = arith.constant 0 : i32
    return %arg0, %c0_i32 : i32, i32
  }
  func.func @transform_1(%arg0: i32) -> (i32, i32) {
    %c0_i32 = arith.constant 0 : i32
    %c0_i32_0 = arith.constant 0 : i32
    %c0_i32_1 = arith.constant 0 : i32
    return %c0_i32, %c0_i32_0 : i32, i32
  }
  func.func @transform_2(%arg0: i32) -> (i32, i32) {
    %c0_i32 = arith.constant 0 : i32
    %c0_i32_0 = arith.constant 0 : i32
    %c0_i32_1 = arith.constant 0 : i32
    return %c0_i32, %c0_i32_0 : i32, i32
  }
  func.func @transform_3(%arg0: i32) -> (i32, i32) {
    %c0_i32 = arith.constant 0 : i32
    %c0_i32_0 = arith.constant 0 : i32
    %c0_i32_1 = arith.constant 0 : i32
    return %c0_i32, %c0_i32_0 : i32, i32
  }
  func.func @transform_4(%arg0: i32) -> (i32, i32) {
    %c0_i32 = arith.constant 0 : i32
    %c0_i32_0 = arith.constant 0 : i32
    %c0_i32_1 = arith.constant 0 : i32
    return %c0_i32, %c0_i32_0 : i32, i32
  }
  func.func @transform_5(%arg0: i32) -> (i32, i32) {
    %c0_i32 = arith.constant 0 : i32
    %c0_i32_0 = arith.constant 0 : i32
    %c0_i32_1 = arith.constant 0 : i32
    return %c0_i32, %c0_i32_0 : i32, i32
  }
  func.func @transform_6(%arg0: i32) -> (i32, i32) {
    %c0_i32 = arith.constant 0 : i32
    %c0_i32_0 = arith.constant 0 : i32
    %c0_i32_1 = arith.constant 0 : i32
    return %c0_i32, %c0_i32_0 : i32, i32
  }
  func.func @transform_7(%arg0: i32) -> (i32, i32) {
    %c0_i32 = arith.constant 0 : i32
    %c0_i32_0 = arith.constant 0 : i32
    return %arg0, %c0_i32 : i32, i32
  }
}

</mosaic_0001>

<llo_original>
// kernel: location_coordinate_head.1
$region0: #{location_coordinate_head.1}
  #allocation0 [shape = 'u32[]', space=smem, size = 0x4, offset = 0x4, fixed_abs, tag = 'smem constant byte address 0x4 - core index']
  #allocation1 [shape = 'u32[144,128]{1,0:T(1,128)}', space=vmem, size = 0x12000, scoped, tag = 'internal scratch']
  %s0 = inlined_call_operand.hbm [shape: f32[16,32], index: 0, kind: input, shape index: {}]
  %s1 = inlined_call_operand.hbm [shape: bf16[32,256], index: 1, kind: input, shape index: {}]
  %s2 = inlined_call_operand.hbm [shape: f32[1,256], index: 2, kind: input, shape index: {}]
  %s3 = inlined_call_operand.hbm [shape: bf16[256,128], index: 3, kind: input, shape index: {}]
  %s4 = inlined_call_operand.hbm [shape: f32[1,128], index: 4, kind: input, shape index: {}]
  %s5 = inlined_call_operand.hbm [shape: bf16[128,2], index: 5, kind: input, shape index: {}]
  %s6 = inlined_call_operand.hbm [shape: f32[1,2], index: 6, kind: input, shape index: {}]
  %s7 = inlined_call_operand.hbm [shape: f32[16,2], index: 7, kind: output, shape index: {}]
  %s8 = sld [smem:[#allocation0]]
  $region66: #{location_coordinate_head.1} parent=0
    _
  %s10 = ssub.s32 1, %s8
  %s11 = scalar_select 0, %s10, %s8
  $region1: #{location_coordinate_head.1} parent=0
    #allocation2 [shape = 'u8[8192]{0}', space=vmem, size = 0x2000, scoped, tag = 'input window, operand 0, single buffered']
    #allocation3 [shape = 's32[1]{0}', space=sflag, size = 0x4, scoped, tag = 'scoped memory for location_coordinate_head.1']
    #allocation4 [shape = 's32[1]{0}', space=sflag, size = 0x4, scoped, tag = 'scoped memory for location_coordinate_head.1']
    #allocation5 [shape = 'u8[16384]{0}', space=vmem, size = 0x4000, scoped, tag = 'input window, operand 1, single buffered']
    #allocation6 [shape = 's32[1]{0}', space=sflag, size = 0x4, scoped, tag = 'scoped memory for location_coordinate_head.1']
    #allocation7 [shape = 'u8[1024]{0}', space=vmem, size = 0x400, scoped, tag = 'input window, operand 2, single buffered']
    #allocation8 [shape = 'u8[65536]{0}', space=vmem, size = 0x10000, scoped, tag = 'input window, operand 3, single buffered']
    #allocation9 [shape = 's32[1]{0}', space=sflag, size = 0x4, scoped, tag = 'scoped memory for location_coordinate_head.1']
    #allocation10 [shape = 'u8[512]{0}', space=vmem, size = 0x400, scoped, tag = 'input window, operand 4, single buffered']
    #allocation11 [shape = 'u8[32768]{0}', space=vmem, size = 0x8000, scoped, tag = 'input window, operand 5, single buffered']
    #allocation12 [shape = 's32[1]{0}', space=sflag, size = 0x4, scoped, tag = 'scoped memory for location_coordinate_head.1']
    #allocation13 [shape = 'u8[512]{0}', space=vmem, size = 0x400, scoped, tag = 'input window, operand 6, single buffered']
    #allocation14 [shape = 'u8[8192]{0}', space=vmem, size = 0x2000, scoped, tag = 'output window, operand 0, single buffered']
    %12 = vsyncpa [#allocation3], 0
    %13 = vsyncpa [#allocation6], 0
    %14 = vsyncpa [#allocation9], 0
    %15 = vsyncpa [#allocation12], 0
    %16 = vsyncpa [#allocation4], 0
    // Predicated region
    $region2: #{location_coordinate_head.1} parent=1 // pred_check
      _
    $region3: #{location_coordinate_head.1} parent=1 // pred_check_branch
      %18 = sbr.rel (0) target = $region5
    $region4: #{location_coordinate_head.1} parent=1 // pred_region
      %s20 = ssub.s32 256, 256
      %21 = vsyncadd [#allocation3], %s20
      %s22 = sshll.u32 [#allocation2], 4
      %s23 = int_to_ptr.vmem [resolvable:$true] %s22
      %28 = dma.hbm_to_vmem [thread:$0]  %s0, 256, %s23, [#allocation3], 128, 128, 8
    $region5: #{location_coordinate_head.1} parent=1 // pred_fallthru
      _
    // Predicated region
    $region6: #{location_coordinate_head.1} parent=1 // pred_check
      _
    $region7: #{location_coordinate_head.1} parent=1 // pred_check_branch
      %30 = sbr.rel (0) target = $region9
    $region8: #{location_coordinate_head.1} parent=1 // pred_region
      %s32 = ssub.s32 512, 512
      %33 = vsyncadd [#allocation6], %s32
      %s34 = sshll.u32 [#allocation5], 4
      %s35 = int_to_ptr.vmem [resolvable:$true] %s34
      %40 = dma.hbm_to_vmem [thread:$0]  %s1, 512, %s35, [#allocation6], 128, 128, 8
    $region9: #{location_coordinate_head.1} parent=1 // pred_fallthru
      _
    // Predicated region
    $region10: #{location_coordinate_head.1} parent=1 // pred_check
      _
    $region11: #{location_coordinate_head.1} parent=1 // pred_check_branch
      %42 = sbr.rel (0) target = $region13
    $region12: #{location_coordinate_head.1} parent=1 // pred_region
      %s44 = ssub.s32 32, 32
      %45 = vsyncadd [#allocation6], %s44
      %s47 = sshll.u32 [#allocation7], 4
      %s48 = int_to_ptr.vmem [resolvable:$true] %s47
      %50 = dma.hbm_to_vmem [thread:$0]  %s2, 32, %s48, [#allocation6]
    $region13: #{location_coordinate_head.1} parent=1 // pred_fallthru
      _
    // Predicated region
    $region14: #{location_coordinate_head.1} parent=1 // pred_check
      _
    $region15: #{location_coordinate_head.1} parent=1 // pred_check_branch
      %52 = sbr.rel (0) target = $region17
    $region16: #{location_coordinate_head.1} parent=1 // pred_region
      %s54 = ssub.s32 2048, 2048
      %55 = vsyncadd [#allocation9], %s54
      %s56 = sshll.u32 [#allocation8], 4
      %s57 = int_to_ptr.vmem [resolvable:$true] %s56
      %62 = dma.hbm_to_vmem [thread:$0]  %s3, 2048, %s57, [#allocation9], 64, 64, 4
    $region17: #{location_coordinate_head.1} parent=1 // pred_fallthru
      _
    // Predicated region
    $region18: #{location_coordinate_head.1} parent=1 // pred_check
      _
    $region19: #{location_coordinate_head.1} parent=1 // pred_check_branch
      %64 = sbr.rel (0) target = $region21
    $region20: #{location_coordinate_head.1} parent=1 // pred_region
      %s66 = ssub.s32 16, 16
      %67 = vsyncadd [#allocation9], %s66
      %s69 = sshll.u32 [#allocation10], 4
      %s70 = int_to_ptr.vmem [resolvable:$true] %s69
      %72 = dma.hbm_to_vmem [thread:$0]  %s4, 16, %s70, [#allocation9]
    $region21: #{location_coordinate_head.1} parent=1 // pred_fallthru
      _
    // Predicated region
    $region22: #{location_coordinate_head.1} parent=1 // pred_check
      _
    $region23: #{location_coordinate_head.1} parent=1 // pred_check_branch
      %74 = sbr.rel (0) target = $region25
    $region24: #{location_coordinate_head.1} parent=1 // pred_region
      %s76 = ssub.s32 1024, 1024
      %77 = vsyncadd [#allocation12], %s76
      %s78 = sshll.u32 [#allocation11], 4
      %s79 = int_to_ptr.vmem [resolvable:$true] %s78
      %84 = dma.hbm_to_vmem [thread:$0]  %s5, 1024, %s79, [#allocation12], 64, 64, 4
    $region25: #{location_coordinate_head.1} parent=1 // pred_fallthru
      _
    // Predicated region
    $region26: #{location_coordinate_head.1} parent=1 // pred_check
      _
    $region27: #{location_coordinate_head.1} parent=1 // pred_check_branch
      %86 = sbr.rel (0) target = $region29
    $region28: #{location_coordinate_head.1} parent=1 // pred_region
      %s88 = ssub.s32 16, 16
      %89 = vsyncadd [#allocation12], %s88
      %s91 = sshll.u32 [#allocation13], 4
      %s92 = int_to_ptr.vmem [resolvable:$true] %s91
      %94 = dma.hbm_to_vmem [thread:$0]  %s6, 16, %s92, [#allocation12]
    $region29: #{location_coordinate_head.1} parent=1 // pred_fallthru
      _
    // Predicated region
    $region30: #{location_coordinate_head.1} parent=1 // pred_check
      _
    $region31: #{location_coordinate_head.1} parent=1 // pred_check_branch
      %96 = sbr.rel (0) target = $region33
    $region32: #{location_coordinate_head.1} parent=1 // pred_region
      %97 = dma.done [#allocation3], 256
    $region33: #{location_coordinate_head.1} parent=1 // pred_fallthru
      _
    // Predicated region
    $region34: #{location_coordinate_head.1} parent=1 // pred_check
      _
    $region35: #{location_coordinate_head.1} parent=1 // pred_check_branch
      %99 = sbr.rel (0) target = $region37
    $region36: #{location_coordinate_head.1} parent=1 // pred_region
      %100 = dma.done [#allocation6], 512
    $region37: #{location_coordinate_head.1} parent=1 // pred_fallthru
      _
    // Predicated region
    $region38: #{location_coordinate_head.1} parent=1 // pred_check
      _
    $region39: #{location_coordinate_head.1} parent=1 // pred_check_branch
      %102 = sbr.rel (0) target = $region41
    $region40: #{location_coordinate_head.1} parent=1 // pred_region
      %103 = dma.done [#allocation6], 32
    $region41: #{location_coordinate_head.1} parent=1 // pred_fallthru
      _
    // Predicated region
    $region42: #{location_coordinate_head.1} parent=1 // pred_check
      _
    $region43: #{location_coordinate_head.1} parent=1 // pred_check_branch
      %105 = sbr.rel (0) target = $region45
    $region44: #{location_coordinate_head.1} parent=1 // pred_region
      %106 = dma.done [#allocation9], 2048
    $region45: #{location_coordinate_head.1} parent=1 // pred_fallthru
      _
    // Predicated region
    $region46: #{location_coordinate_head.1} parent=1 // pred_check
      _
    $region47: #{location_coordinate_head.1} parent=1 // pred_check_branch
      %108 = sbr.rel (0) target = $region49
    $region48: #{location_coordinate_head.1} parent=1 // pred_region
      %109 = dma.done [#allocation9], 16
    $region49: #{location_coordinate_head.1} parent=1 // pred_fallthru
      _
    // Predicated region
    $region50: #{location_coordinate_head.1} parent=1 // pred_check
      _
    $region51: #{location_coordinate_head.1} parent=1 // pred_check_branch
      %111 = sbr.rel (0) target = $region53
    $region52: #{location_coordinate_head.1} parent=1 // pred_region
      %112 = dma.done [#allocation12], 1024
    $region53: #{location_coordinate_head.1} parent=1 // pred_fallthru
      _
    // Predicated region
    $region54: #{location_coordinate_head.1} parent=1 // pred_check
      _
    $region55: #{location_coordinate_head.1} parent=1 // pred_check_branch
      %114 = sbr.rel (0) target = $region57
    $region56: #{location_coordinate_head.1} parent=1 // pred_region
      %115 = dma.done [#allocation12], 16
    $region57: #{location_coordinate_head.1} parent=1 // pred_fallthru
      _
    %v117 = vld [vmem:[#allocation2] sm:$0xff]
    %v118 = vld [vmem:[#allocation2 + $0x8] sm:$0xff]
    %v119 = vpack.c.bf16 %v118, %v117
    %v120 = vld [vmem:[#allocation5] sm:$0xff]
    %v121 = vld [vmem:[#allocation5 + $0x8] sm:$0xff]
    %v122 = vld [vmem:[#allocation5 + $0x10] sm:$0xff]
    %v123 = vld [vmem:[#allocation5 + $0x18] sm:$0xff]
    %v124 = vld [vmem:[#allocation7] sm:$0x3]
    %v126 = vlaneseq
    %v127 = vshrl.u32 %v126, 7
    %v128 = vsub.s32 0, %v127
    %v129 = vrot.slane %v124, %v128
    %v130 = vlaneseq
    %v131 = vshrl.u32 %v130, 7
    %v132 = vsub.s32 1, %v131
    %v133 = vrot.slane %v124, %v132
    %v140 = vunpack.c.l.b16 %v120
    %v141 = vunpack.c.h.b16 %v120
    %v142 = vunpack.c.l.b16 %v121
    %v143 = vunpack.c.h.b16 %v121
    %v144 = vunpack.c.l.b16 %v122
    %v145 = vunpack.c.h.b16 %v122
    %v146 = vunpack.c.l.b16 %v123
    %v147 = vunpack.c.h.b16 %v123
    %v148 = vpack.c.b16 %v142, %v140
    %v149 = vpack.c.b16 %v143, %v141
    %v150 = vpack.c.b16 %v146, %v144
    %v151 = vpack.c.b16 %v147, %v145
    %vm156 = vcmask 261120
    %v158 = vsel %vm156, %v119, 0
    %160 = vmatprep.subr.bf16.mxu0 %v149
    %161 = vmatpush1.bf16.msra.mxu0 %v148
    %162 = vmatprep.subr.bf16.mxu0 %v151
    %163 = vmatpush1.bf16.msra.mxu0 %v150
    %164 = vmatprep.subr.bf16.mxu0 0
    %165 = vmatpush1.bf16.msra.mxu0 0
    %166 = vmatprep.subr.bf16.mxu0 0
    %167 = vmatpush1.bf16.msra.mxu0 0
    %168 = vmatprep.subr.bf16.mxu0 0
    %169 = vmatpush1.bf16.msra.mxu0 0
    %170 = vmatprep.subr.bf16.mxu0 0
    %171 = vmatpush1.bf16.msra.mxu0 0
    %172 = vmatprep.subr.bf16.mxu0 0
    %173 = vmatpush1.bf16.msra.mxu0 0
    %174 = vmatprep.subr.bf16.mxu0 0
    %175 = vmatpush1.bf16.msra.mxu0 0
    %176 = vmatprep.subr.bf16.mxu0 0
    %177 = vmatpush1.bf16.msra.mxu0 0
    %178 = vmatprep.subr.bf16.mxu0 0
    %179 = vmatpush1.bf16.msra.mxu0 0
    %180 = vmatprep.subr.bf16.mxu0 0
    %181 = vmatpush1.bf16.msra.mxu0 0
    %182 = vmatprep.subr.bf16.mxu0 0
    %183 = vmatpush1.bf16.msra.mxu0 0
    %184 = vmatprep.subr.bf16.mxu0 0
    %185 = vmatpush1.bf16.msra.mxu0 0
    %186 = vmatprep.subr.bf16.mxu0 0
    %187 = vmatpush1.bf16.msra.mxu0 0
    %188 = vmatprep.subr.bf16.mxu0 0
    %189 = vmatpush1.bf16.msra.mxu0 0
    %190 = vmatprep.subr.bf16.mxu0 0
    %191 = vmatpush1.bf16.msra.mxu0 0
    %192 = vmatprep.mubr.bf16.mxu0 0
    %193 = vmatmul.mubr.bf16.gmra.mrb[0].mxu0 %v158
    %v194 = vpop.f32.mrb[0].mxu0
    %v195 = vadd.f32 %v129, %v194
    %v196 = vpop.f32.mrb[0].mxu0
    %v197 = vadd.f32 %v133, %v196
    %v198 = vpop.f32.mrb[0].mxu0
    %v199 = vadd.f32 %v129, %v198
    %v200 = vpop.f32.mrb[0].mxu0
    %v201 = vadd.f32 %v133, %v200
    %202 = vdwg.mxu0
    %v203 = vmax.f32 %v195, 0.0
    %v204 = vmax.f32 %v197, 0.0
    %v205 = vmax.f32 %v199, 0.0
    %v206 = vmax.f32 %v201, 0.0
    %v207 = vpack.c.bf16 %v205, %v203
    %v208 = vpack.c.bf16 %v206, %v204
    %v209 = vld [vmem:[#allocation8] sm:$0xf]
    %v210 = vld [vmem:[#allocation8 + $0x4] sm:$0xf]
    %v211 = vld [vmem:[#allocation8 + $0x8] sm:$0xf]
    %v212 = vld [vmem:[#allocation8 + $0xc] sm:$0xf]
    %v213 = vld [vmem:[#allocation8 + $0x10] sm:$0xf]
    %v214 = vld [vmem:[#allocation8 + $0x14] sm:$0xf]
    %v215 = vld [vmem:[#allocation8 + $0x18] sm:$0xf]
    %v216 = vld [vmem:[#allocation8 + $0x1c] sm:$0xf]
    %v217 = vld [vmem:[#allocation8 + $0x20] sm:$0xf]
    %v218 = vld [vmem:[#allocation8 + $0x24] sm:$0xf]
    %v219 = vld [vmem:[#allocation8 + $0x28] sm:$0xf]
    %v220 = vld [vmem:[#allocation8 + $0x2c] sm:$0xf]
    %v221 = vld [vmem:[#allocation8 + $0x30] sm:$0xf]
    %v222 = vld [vmem:[#allocation8 + $0x34] sm:$0xf]
    %v223 = vld [vmem:[#allocation8 + $0x38] sm:$0xf]
    %v224 = vld [vmem:[#allocation8 + $0x3c] sm:$0xf]
    %v225 = vld [vmem:[#allocation8 + $0x40] sm:$0xf]
    %v226 = vld [vmem:[#allocation8 + $0x44] sm:$0xf]
    %v227 = vld [vmem:[#allocation8 + $0x48] sm:$0xf]
    %v228 = vld [vmem:[#allocation8 + $0x4c] sm:$0xf]
    %v229 = vld [vmem:[#allocation8 + $0x50] sm:$0xf]
    %v230 = vld [vmem:[#allocation8 + $0x54] sm:$0xf]
    %v231 = vld [vmem:[#allocation8 + $0x58] sm:$0xf]
    %v232 = vld [vmem:[#allocation8 + $0x5c] sm:$0xf]
    %v233 = vld [vmem:[#allocation8 + $0x60] sm:$0xf]
    %v234 = vld [vmem:[#allocation8 + $0x64] sm:$0xf]
    %v235 = vld [vmem:[#allocation8 + $0x68] sm:$0xf]
    %v236 = vld [vmem:[#allocation8 + $0x6c] sm:$0xf]
    %v237 = vld [vmem:[#allocation8 + $0x70] sm:$0xf]
    %v238 = vld [vmem:[#allocation8 + $0x74] sm:$0xf]
    %v239 = vld [vmem:[#allocation8 + $0x78] sm:$0xf]
    %v240 = vld [vmem:[#allocation8 + $0x7c] sm:$0xf]
    %v241 = vld [vmem:[#allocation10] sm:$0x1]
    %v243 = vlaneseq
    %v244 = vshrl.u32 %v243, 7
    %v245 = vsub.s32 0, %v244
    %v246 = vrot.slane %v241, %v245
    %v280 = vunpack.c.l.b16 %v209
    %v281 = vunpack.c.l.b16 %v210
    %v282 = vunpack.c.l.b16 %v211
    %v283 = vunpack.c.l.b16 %v212
    %v284 = vunpack.c.l.b16 %v213
    %v285 = vunpack.c.l.b16 %v214
    %v286 = vunpack.c.l.b16 %v215
    %v287 = vunpack.c.l.b16 %v216
    %v288 = vunpack.c.l.b16 %v217
    %v289 = vunpack.c.l.b16 %v218
    %v290 = vunpack.c.l.b16 %v219
    %v291 = vunpack.c.l.b16 %v220
    %v292 = vunpack.c.l.b16 %v221
    %v293 = vunpack.c.l.b16 %v222
    %v294 = vunpack.c.l.b16 %v223
    %v295 = vunpack.c.l.b16 %v224
    %v296 = vunpack.c.l.b16 %v225
    %v297 = vunpack.c.l.b16 %v226
    %v298 = vunpack.c.l.b16 %v227
    %v299 = vunpack.c.l.b16 %v228
    %v300 = vunpack.c.l.b16 %v229
    %v301 = vunpack.c.l.b16 %v230
    %v302 = vunpack.c.l.b16 %v231
    %v303 = vunpack.c.l.b16 %v232
    %v304 = vunpack.c.l.b16 %v233
    %v305 = vunpack.c.l.b16 %v234
    %v306 = vunpack.c.l.b16 %v235
    %v307 = vunpack.c.l.b16 %v236
    %v308 = vunpack.c.l.b16 %v237
    %v309 = vunpack.c.l.b16 %v238
    %v310 = vunpack.c.l.b16 %v239
    %v311 = vunpack.c.l.b16 %v240
    %v312 = vpack.c.b16 %v281, %v280
    %v313 = vpack.c.b16 %v283, %v282
    %v314 = vpack.c.b16 %v285, %v284
    %v315 = vpack.c.b16 %v287, %v286
    %v316 = vpack.c.b16 %v289, %v288
    %v317 = vpack.c.b16 %v291, %v290
    %v318 = vpack.c.b16 %v293, %v292
    %v319 = vpack.c.b16 %v295, %v294
    %v320 = vpack.c.b16 %v297, %v296
    %v321 = vpack.c.b16 %v299, %v298
    %v322 = vpack.c.b16 %v301, %v300
    %v323 = vpack.c.b16 %v303, %v302
    %v324 = vpack.c.b16 %v305, %v304
    %v325 = vpack.c.b16 %v307, %v306
    %v326 = vpack.c.b16 %v309, %v308
    %v327 = vpack.c.b16 %v311, %v310
    %344 = vmatprep.subr.bf16.mxu0 0
    %345 = vmatpush1.bf16.msra.mxu0 %v312
    %346 = vmatprep.subr.bf16.mxu0 0
    %347 = vmatpush1.bf16.msra.mxu0 %v313
    %348 = vmatprep.subr.bf16.mxu0 0
    %349 = vmatpush1.bf16.msra.mxu0 %v314
    %350 = vmatprep.subr.bf16.mxu0 0
    %351 = vmatpush1.bf16.msra.mxu0 %v315
    %352 = vmatprep.subr.bf16.mxu0 0
    %353 = vmatpush1.bf16.msra.mxu0 %v316
    %354 = vmatprep.subr.bf16.mxu0 0
    %355 = vmatpush1.bf16.msra.mxu0 %v317
    %356 = vmatprep.subr.bf16.mxu0 0
    %357 = vmatpush1.bf16.msra.mxu0 %v318
    %358 = vmatprep.subr.bf16.mxu0 0
    %359 = vmatpush1.bf16.msra.mxu0 %v319
    %360 = vmatprep.subr.bf16.mxu0 0
    %361 = vmatpush1.bf16.msra.mxu0 %v320
    %362 = vmatprep.subr.bf16.mxu0 0
    %363 = vmatpush1.bf16.msra.mxu0 %v321
    %364 = vmatprep.subr.bf16.mxu0 0
    %365 = vmatpush1.bf16.msra.mxu0 %v322
    %366 = vmatprep.subr.bf16.mxu0 0
    %367 = vmatpush1.bf16.msra.mxu0 %v323
    %368 = vmatprep.subr.bf16.mxu0 0
    %369 = vmatpush1.bf16.msra.mxu0 %v324
    %370 = vmatprep.subr.bf16.mxu0 0
    %371 = vmatpush1.bf16.msra.mxu0 %v325
    %372 = vmatprep.subr.bf16.mxu0 0
    %373 = vmatpush1.bf16.msra.mxu0 %v326
    %374 = vmatprep.subr.bf16.mxu0 0
    %375 = vmatpush1.bf16.msra.mxu0 %v327
    %376 = vmatprep.mubr.bf16.mxu0 %v208
    %377 = vmatmul.mubr.bf16.gmra.mrb[0].mxu0 %v207
    %v378 = vpop.f32.mrb[0].mxu0
    %v379 = vadd.f32 %v246, %v378
    %v380 = vpop.f32.mrb[0].mxu0
    %v381 = vpop.f32.mrb[0].mxu0
    %v382 = vadd.f32 %v246, %v381
    %v383 = vpop.f32.mrb[0].mxu0
    %384 = vdwg.mxu0
    %v385 = vmax.f32 %v379, 0.0
    %v386 = vmax.f32 %v382, 0.0
    %v387 = vpack.c.bf16 %v386, %v385
    %v388 = vld [vmem:[#allocation11] sm:$0xf]
    %v389 = vld [vmem:[#allocation11 + $0x4] sm:$0xf]
    %v390 = vld [vmem:[#allocation11 + $0x8] sm:$0xf]
    %v391 = vld [vmem:[#allocation11 + $0xc] sm:$0xf]
    %v392 = vld [vmem:[#allocation11 + $0x10] sm:$0xf]
    %v393 = vld [vmem:[#allocation11 + $0x14] sm:$0xf]
    %v394 = vld [vmem:[#allocation11 + $0x18] sm:$0xf]
    %v395 = vld [vmem:[#allocation11 + $0x1c] sm:$0xf]
    %v396 = vld [vmem:[#allocation11 + $0x20] sm:$0xf]
    %v397 = vld [vmem:[#allocation11 + $0x24] sm:$0xf]
    %v398 = vld [vmem:[#allocation11 + $0x28] sm:$0xf]
    %v399 = vld [vmem:[#allocation11 + $0x2c] sm:$0xf]
    %v400 = vld [vmem:[#allocation11 + $0x30] sm:$0xf]
    %v401 = vld [vmem:[#allocation11 + $0x34] sm:$0xf]
    %v402 = vld [vmem:[#allocation11 + $0x38] sm:$0xf]
    %v403 = vld [vmem:[#allocation11 + $0x3c] sm:$0xf]
    %v404 = vld [vmem:[#allocation13] sm:$0x1]
    %v406 = vlaneseq
    %v407 = vshrl.u32 %v406, 7
    %v408 = vsub.s32 0, %v407
    %v409 = vrot.slane %v404, %v408
    %v427 = vunpack.c.l.b16 %v388
    %v428 = vunpack.c.l.b16 %v389
    %v429 = vunpack.c.l.b16 %v390
    %v430 = vunpack.c.l.b16 %v391
    %v431 = vunpack.c.l.b16 %v392
    %v432 = vunpack.c.l.b16 %v393
    %v433 = vunpack.c.l.b16 %v394
    %v434 = vunpack.c.l.b16 %v395
    %v435 = vunpack.c.l.b16 %v396
    %v436 = vunpack.c.l.b16 %v397
    %v437 = vunpack.c.l.b16 %v398
    %v438 = vunpack.c.l.b16 %v399
    %v439 = vunpack.c.l.b16 %v400
    %v440 = vunpack.c.l.b16 %v401
    %v441 = vunpack.c.l.b16 %v402
    %v442 = vunpack.c.l.b16 %v403
    %v443 = vpack.c.b16 %v428, %v427
    %v444 = vpack.c.b16 %v430, %v429
    %v445 = vpack.c.b16 %v432, %v431
    %v446 = vpack.c.b16 %v434, %v433
    %v447 = vpack.c.b16 %v436, %v435
    %v448 = vpack.c.b16 %v438, %v437
    %v449 = vpack.c.b16 %v440, %v439
    %v450 = vpack.c.b16 %v442, %v441
    %459 = vmatprep.subr.bf16.mxu0 0
    %460 = vmatpush1.bf16.msra.mxu0 %v443
    %461 = vmatprep.subr.bf16.mxu0 0
    %462 = vmatpush1.bf16.msra.mxu0 %v444
    %463 = vmatprep.subr.bf16.mxu0 0
    %464 = vmatpush1.bf16.msra.mxu0 %v445
    %465 = vmatprep.subr.bf16.mxu0 0
    %466 = vmatpush1.bf16.msra.mxu0 %v446
    %467 = vmatprep.subr.bf16.mxu0 0
    %468 = vmatpush1.bf16.msra.mxu0 %v447
    %469 = vmatprep.subr.bf16.mxu0 0
    %470 = vmatpush1.bf16.msra.mxu0 %v448
    %471 = vmatprep.subr.bf16.mxu0 0
    %472 = vmatpush1.bf16.msra.mxu0 %v449
    %473 = vmatprep.subr.bf16.mxu0 0
    %474 = vmatpush1.bf16.msra.mxu0 %v450
    %475 = vmatprep.subr.bf16.mxu0 0
    %476 = vmatpush1.bf16.msra.mxu0 0
    %477 = vmatprep.subr.bf16.mxu0 0
    %478 = vmatpush1.bf16.msra.mxu0 0
    %479 = vmatprep.subr.bf16.mxu0 0
    %480 = vmatpush1.bf16.msra.mxu0 0
    %481 = vmatprep.subr.bf16.mxu0 0
    %482 = vmatpush1.bf16.msra.mxu0 0
    %483 = vmatprep.subr.bf16.mxu0 0
    %484 = vmatpush1.bf16.msra.mxu0 0
    %485 = vmatprep.subr.bf16.mxu0 0
    %486 = vmatpush1.bf16.msra.mxu0 0
    %487 = vmatprep.subr.bf16.mxu0 0
    %488 = vmatpush1.bf16.msra.mxu0 0
    %489 = vmatprep.subr.bf16.mxu0 0
    %490 = vmatpush1.bf16.msra.mxu0 0
    %491 = vmatprep.mubr.bf16.mxu0 0
    %492 = vmatmul.mubr.bf16.gmra.mrb[0].mxu0 %v387
    %v493 = vpop.f32.mrb[0].mxu0
    %v494 = vadd.f32 %v409, %v493
    %v495 = vpop.f32.mrb[0].mxu0
    %v496 = vpop.f32.mrb[0].mxu0
    %v497 = vadd.f32 %v409, %v496
    %v498 = vpop.f32.mrb[0].mxu0
    %499 = vdwg.mxu0
    %vm500 = vcmask 15360
    %501 = vst.msk [vmem:[#allocation14] sm:$0xff] %vm500, %v494
    %502 = vst.msk [vmem:[#allocation14 + $0x8] sm:$0xff] %vm500, %v497
    // Predicated region
    $region58: #{location_coordinate_head.1} parent=1 // pred_check
      _
    $region59: #{location_coordinate_head.1} parent=1 // pred_check_branch
      %504 = sbr.rel (0) target = $region61
    $region60: #{location_coordinate_head.1} parent=1 // pred_region
      %s506 = ssub.s32 256, 256
      %507 = vsyncadd [#allocation4], %s506
      %s508 = sshll.u32 [#allocation14], 4
      %s509 = int_to_ptr.vmem [resolvable:$true] %s508
      %514 = dma.vmem_to_hbm [thread:$0]  %s509, 256, %s7, [#allocation4], 128, 128, 8
    $region61: #{location_coordinate_head.1} parent=1 // pred_fallthru
      _
    // Predicated region
    $region62: #{location_coordinate_head.1} parent=1 // pred_check
      _
    $region63: #{location_coordinate_head.1} parent=1 // pred_check_branch
      %516 = sbr.rel (0) target = $region65
    $region64: #{location_coordinate_head.1} parent=1 // pred_region
      %517 = dma.done [#allocation4], 256
    $region65: #{location_coordinate_head.1} parent=1 // pred_fallthru
      _
    %518 = vsyncpa [#allocation3], 1
    %519 = vsyncpa [#allocation6], 1
    %520 = vsyncpa [#allocation9], 1
    %521 = vsyncpa [#allocation12], 1
    %522 = vsyncpa [#allocation4], 1

</llo_original>
